<compile_context>
chip_gen: v5e
topology: v5e:2x2
jax: 0.10.0
libtpu: 0.0.40
codegen_flags: <defaults>
</compile_context>

<pallas_src>
import functools
import math

import jax
import jax.numpy as jnp
from jax import lax
from jax.experimental import pallas as pl
from jax.experimental.pallas import tpu as pltpu


def _conv3x3_im2col_kernel(x_ref, w_ref, b_ref, o_ref, col_ref, *, W):
    """3x3 stride-1 'same' conv for one batch element, spatial on the lane axis.

    x_ref:   (Cin, H*W)     input activations (lane-dense)
    w_ref:   (Cout, 9*Cin)  packed weights, column index = (dy*3+dx)*Cin + cin
    b_ref:   (Cout, 1)      bias
    o_ref:   (Cout, H*W)    conv output (pre pixel-shuffle), lane-dense store
    col_ref: (9*Cin, H*W)   VMEM im2col scratch
    """
    Cin, HW = x_ref.shape
    xv = x_ref[...].astype(jnp.float32)

    # Flattened spatial index p = y*W + x and the x coordinate, for halo masks.
    pos = lax.broadcasted_iota(jnp.int32, (Cin, HW), 1)
    xcol = pos % W

    # Build the im2col matrix in VMEM: row block t = dy*3 + dx holds the input
    # shifted by (dy-1, dx-1).  Zero padding is realized with lane masks on the
    # rolled values (no HBM-side jnp.pad, no padded activation copy).
    for dy in range(3):
        for dx in range(3):
            t = dy * 3 + dx
            shift = (dy - 1) * W + (dx - 1)  # flat offset into the unpadded image
            if shift == 0:
                tap = xv                      # center tap: no shift, no mask
            else:
                rolled = pltpu.roll(xv, shift=(-shift) % HW, axis=1)
                q = pos + shift
                valid = (q >= 0) & (q < HW)   # top / bottom halo rows -> zero
                if dx == 0:
                    valid = valid & (xcol != 0)          # left halo column
                elif dx == 2:
                    valid = valid & (xcol != W - 1)      # right halo column
                tap = jnp.where(valid, rolled, 0.0)
            col_ref[t * Cin:(t + 1) * Cin, :] = tap

    # Single fat MXU contraction: (Cout, 9*Cin) @ (9*Cin, H*W) -> (Cout, H*W).
    acc = jnp.dot(w_ref[...].astype(jnp.float32), col_ref[...],
                  preferred_element_type=jnp.float32)
    acc = acc + b_ref[...].astype(jnp.float32)           # bias broadcast over lanes
    o_ref[...] = acc.astype(o_ref.dtype)


def conv3x3_flat(x_flat, w_packed, b_col, *, H, W):
    """3x3 'same' conv.  x_flat: (N, Cin, H*W) -> (N, Cout, H*W)."""
    del H  # spatial extent is fully encoded in H*W; W is needed for halo masks
    N, Cin, HW = x_flat.shape
    Cout = w_packed.shape[0]
    kernel = functools.partial(_conv3x3_im2col_kernel, W=W)
    # TODO(synk): for large images, add a row-tile grid axis with a 1-row halo so the
    # per-step VMEM footprint stays bounded (whole image per grid step is fine here).
    return pl.pallas_call(
        kernel,
        out_shape=jax.ShapeDtypeStruct((N, Cout, HW), x_flat.dtype),
        grid_spec=pltpu.PrefetchScalarGridSpec(
            num_scalar_prefetch=0,
            grid=(N,),  # one batch element per step; "parallel" -> both v7x TCs busy
            in_specs=[
                pl.BlockSpec((None, Cin, HW), lambda n: (n, 0, 0)),
                pl.BlockSpec((Cout, 9 * Cin), lambda n: (0, 0)),
                pl.BlockSpec((Cout, 1), lambda n: (0, 0)),
            ],
            out_specs=pl.BlockSpec((None, Cout, HW), lambda n: (n, 0, 0)),
            scratch_shapes=[pltpu.VMEM((9 * Cin, HW), jnp.float32)],
        ),
        compiler_params=pltpu.CompilerParams(
            dimension_semantics=("parallel",)),
    )(x_flat, w_packed, b_col)


def pixel_shuffle_flat(y_flat, num_channels, r, H, W):
    """PixelShuffle(r) on flattened-spatial activations (PyTorch channel order)."""
    # TODO(synk): the stride-r lane interleave of PixelShuffle has no safe Pallas/Mosaic
    # scatter-store pattern, so the shuffle stays as one XLA transpose between stages.
    N = y_flat.shape[0]
    y = y_flat.reshape(N, num_channels, r, r, H, W)       # k = c*r*r + i*r + j
    y = y.transpose(0, 1, 4, 2, 5, 3)                     # (N, C, H, r, W, r)
    return y.reshape(N, num_channels, (H * r) * (W * r))


def init_upsample_params(key, num_channels, scale):
    """Deterministic init mirroring nn.Conv2d default (uniform +-1/sqrt(fan_in))."""
    if scale in (2, 4, 8):
        n_stages, r = int(math.log(scale, 2)), 2
    elif scale == 3:
        n_stages, r = 1, 3
    else:
        n_stages, r = 0, 1
    params = []
    c = num_channels
    for _ in range(n_stages):
        key, kw, kb = jax.random.split(key, 3)
        cout = r * r * c
        bound = 1.0 / math.sqrt(c * 3 * 3)
        # Keep PyTorch layout (Cout, Cin, 3, 3); packing happens in the wrapper.
        w_pt = jax.random.uniform(kw, (cout, c, 3, 3), jnp.float32, -bound, bound)
        b = jax.random.uniform(kb, (cout,), jnp.float32, -bound, bound)
        params.append((w_pt, b))
    return params, r


def upsample_block(x_nchw, params, r):
    """Forward pass of UpsampleBlock. Input/output in NCHW (PyTorch convention)."""
    N, C, H, W = x_nchw.shape
    x = x_nchw.reshape(N, C, H * W)  # flatten spatial onto the lane axis (free)
    for w_pt, b in params:
        cout = w_pt.shape[0]
        # (Cout, Cin, 3, 3) -> (Cout, 9*Cin) with column (dy*3+dx)*Cin + cin
        w_packed = jnp.transpose(w_pt, (0, 2, 3, 1)).reshape(cout, 9 * C)
        y = conv3x3_flat(x, w_packed, b.reshape(cout, 1), H=H, W=W)  # Pallas conv
        x = pixel_shuffle_flat(y, C, r, H, W)
        H, W = H * r, W * r
    return x.reshape(N, C, H, W)


def _reference_forward(x_nchw, params, r):
    """Pure-JAX reference (lax.conv + PixelShuffle) for correctness checking."""
    x = x_nchw
    for w_pt, b in params:
        y = lax.conv_general_dilated(
            x, w_pt, window_strides=(1, 1), padding="SAME",
            dimension_numbers=("NCHW", "OIHW", "NCHW")) + b.reshape(1, -1, 1, 1)
        N, K, H, W = y.shape
        C = K // (r * r)
        y = y.reshape(N, C, r, r, H, W).transpose(0, 1, 4, 2, 5, 3)
        x = y.reshape(N, C, H * r, W * r)
    return x


if __name__ == "__main__":
    key = jax.random.PRNGKey(0)
    k_x, k_p = jax.random.split(key)

    N, C, H, W = 2, 4, 16, 16
    scale = 2
    x = jax.random.normal(k_x, (N, C, H, W), jnp.float32)

    params, r = init_upsample_params(k_p, C, scale)

    fwd = jax.jit(functools.partial(upsample_block, r=r))
    out = jax.block_until_ready(fwd(x, params))

    # sanity: shape (N, C, H*scale, W*scale) and numerics vs pure-JAX reference
    assert out.shape == (N, C, H * scale, W * scale), out.shape
    ref = jax.block_until_ready(_reference_forward(x, params, r))
    assert jnp.allclose(out, ref, atol=1e-4, rtol=1e-4), float(jnp.max(jnp.abs(out - ref)))

    print("KERNEL_OK")
</pallas_src>

<mosaic_0001>
module attributes {stable_mosaic.version = 11 : i64} {
  func.func @_conv3x3_im2col_kernel(%arg0: i32, %arg1: memref<1x4x256xf32, #tpu.memory_space<vmem>>, %arg2: memref<16x36xf32, #tpu.memory_space<vmem>>, %arg3: memref<16x1xf32, #tpu.memory_space<vmem>>, %arg4: memref<1x16x256xf32, #tpu.memory_space<vmem>>, %arg5: memref<36x256xf32, #tpu.memory_space<vmem>>) attributes {dimension_semantics = [#tpu.dimension_semantics<parallel>], iteration_bounds = array<i64: 2>, scalar_prefetch = 0 : i64, scratch_operands = 1 : i64, tpu.core_type = #tpu.core_type<tc>, window_params = [{transform_indices = @transform_0, window_bounds = array<i64: 1, 4, 256>}, {pipeline_mode = #tpu.pipeline_mode<synchronous>, transform_indices = @transform_1, window_bounds = array<i64: 16, 36>}, {pipeline_mode = #tpu.pipeline_mode<synchronous>, transform_indices = @transform_2, window_bounds = array<i64: 16, 1>}, {transform_indices = @transform_3, window_bounds = array<i64: 1, 16, 256>}]} {
    %c0 = arith.constant 0 : index
    %c0_0 = arith.constant 0 : index
    %c0_1 = arith.constant 0 : index
    %0 = vector.load %arg1[%c0, %c0_0, %c0_1] : memref<1x4x256xf32, #tpu.memory_space<vmem>>, vector<1x4x256xf32>
    %1 = vector.shape_cast %0 : vector<1x4x256xf32> to vector<4x256xf32>
    %2 = tpu.iota {dimensions = array<i32: 1>} : vector<4x256xi32>
    %c16_i32 = arith.constant 16 : i32
    %c0_i32 = arith.constant 0 : i32
    %3 = arith.cmpi eq, %c16_i32, %c0_i32 : i32
    %c1_i32 = arith.constant 1 : i32
    %4 = arith.select %3, %c1_i32, %c16_i32 : i32
    %5 = vector.broadcast %4 : i32 to vector<4x256xi32>
    %6 = arith.remsi %2, %5 : vector<4x256xi32>
    %c0_i32_2 = arith.constant 0 : i32
    %7 = vector.broadcast %c0_i32_2 : i32 to vector<4x256xi32>
    %8 = arith.cmpi ne, %6, %7 : vector<4x256xi32>
    %c0_i32_3 = arith.constant 0 : i32
    %9 = vector.broadcast %c0_i32_3 : i32 to vector<4x256xi32>
    %10 = arith.cmpi slt, %6, %9 : vector<4x256xi32>
    %c0_i32_4 = arith.constant 0 : i32
    %11 = arith.cmpi slt, %4, %c0_i32_4 : i32
    %12 = vector.broadcast %11 : i1 to vector<4x256xi1>
    %13 = vector.broadcast %12 : vector<4x256xi1> to vector<4x256xi1>
    %14 = arith.xori %10, %13 : vector<4x256xi1>
    %15 = arith.andi %14, %8 : vector<4x256xi1>
    %16 = vector.broadcast %4 : i32 to vector<4x256xi32>
    %17 = arith.addi %6, %16 : vector<4x256xi32>
    %18 = arith.select %15, %17, %6 : vector<4x256xi1>, vector<4x256xi32>
    %c17_i32 = arith.constant 17 : i32
    %19 = tpu.dynamic_rotate %1 by %c17_i32 dim 1 : vector<4x256xf32>, i32 -> vector<4x256xf32>
    %c-17_i32 = arith.constant -17 : i32
    %20 = vector.broadcast %c-17_i32 : i32 to vector<4x256xi32>
    %21 = arith.addi %2, %20 : vector<4x256xi32>
    %c0_i32_5 = arith.constant 0 : i32
    %22 = vector.broadcast %c0_i32_5 : i32 to vector<4x256xi32>
    %23 = arith.cmpi sge, %21, %22 : vector<4x256xi32>
    %c256_i32 = arith.constant 256 : i32
    %24 = vector.broadcast %c256_i32 : i32 to vector<4x256xi32>
    %25 = arith.cmpi slt, %21, %24 : vector<4x256xi32>
    %26 = arith.andi %23, %25 : vector<4x256xi1>
    %c0_i32_6 = arith.constant 0 : i32
    %27 = vector.broadcast %c0_i32_6 : i32 to vector<4x256xi32>
    %28 = arith.cmpi ne, %18, %27 : vector<4x256xi32>
    %29 = arith.andi %26, %28 : vector<4x256xi1>
    %cst = arith.constant 0.000000e+00 : f32
    %30 = vector.broadcast %cst : f32 to vector<4x256xf32>
    %31 = arith.select %29, %19, %30 : vector<4x256xi1>, vector<4x256xf32>
    %c0_7 = arith.constant 0 : index
    %c0_8 = arith.constant 0 : index
    %32 = vector.load %arg5[%c0_7, %c0_8] : memref<36x256xf32, #tpu.memory_space<vmem>>, vector<4x256xf32>
    tpu.vector_store %arg5[%c0_7, %c0_8], %31 {strides = array<i32>} : memref<36x256xf32, #tpu.memory_space<vmem>>, vector<4x256xf32>,
    %c16_i32_9 = arith.constant 16 : i32
    %33 = tpu.dynamic_rotate %1 by %c16_i32_9 dim 1 : vector<4x256xf32>, i32 -> vector<4x256xf32>
    %c-16_i32 = arith.constant -16 : i32
    %34 = vector.broadcast %c-16_i32 : i32 to vector<4x256xi32>
    %35 = arith.addi %2, %34 : vector<4x256xi32>
    %c0_i32_10 = arith.constant 0 : i32
    %36 = vector.broadcast %c0_i32_10 : i32 to vector<4x256xi32>
    %37 = arith.cmpi sge, %35, %36 : vector<4x256xi32>
    %c256_i32_11 = arith.constant 256 : i32
    %38 = vector.broadcast %c256_i32_11 : i32 to vector<4x256xi32>
    %39 = arith.cmpi slt, %35, %38 : vector<4x256xi32>
    %40 = arith.andi %37, %39 : vector<4x256xi1>
    %cst_12 = arith.constant 0.000000e+00 : f32
    %41 = vector.broadcast %cst_12 : f32 to vector<4x256xf32>
    %42 = arith.select %40, %33, %41 : vector<4x256xi1>, vector<4x256xf32>
    %c4 = arith.constant 4 : index
    %c0_13 = arith.constant 0 : index
    %43 = vector.load %arg5[%c4, %c0_13] : memref<36x256xf32, #tpu.memory_space<vmem>>, vector<4x256xf32>
    tpu.vector_store %arg5[%c4, %c0_13], %42 {strides = array<i32>} : memref<36x256xf32, #tpu.memory_space<vmem>>, vector<4x256xf32>,
    %c15_i32 = arith.constant 15 : i32
    %44 = tpu.dynamic_rotate %1 by %c15_i32 dim 1 : vector<4x256xf32>, i32 -> vector<4x256xf32>
    %c-15_i32 = arith.constant -15 : i32
    %45 = vector.broadcast %c-15_i32 : i32 to vector<4x256xi32>
    %46 = arith.addi %2, %45 : vector<4x256xi32>
    %c0_i32_14 = arith.constant 0 : i32
    %47 = vector.broadcast %c0_i32_14 : i32 to vector<4x256xi32>
    %48 = arith.cmpi sge, %46, %47 : vector<4x256xi32>
    %c256_i32_15 = arith.constant 256 : i32
    %49 = vector.broadcast %c256_i32_15 : i32 to vector<4x256xi32>
    %50 = arith.cmpi slt, %46, %49 : vector<4x256xi32>
    %51 = arith.andi %48, %50 : vector<4x256xi1>
    %c15_i32_16 = arith.constant 15 : i32
    %52 = vector.broadcast %c15_i32_16 : i32 to vector<4x256xi32>
    %53 = arith.cmpi ne, %18, %52 : vector<4x256xi32>
    %54 = arith.andi %51, %53 : vector<4x256xi1>
    %cst_17 = arith.constant 0.000000e+00 : f32
    %55 = vector.broadcast %cst_17 : f32 to vector<4x256xf32>
    %56 = arith.select %54, %44, %55 : vector<4x256xi1>, vector<4x256xf32>
    %c8 = arith.constant 8 : index
    %c0_18 = arith.constant 0 : index
    %57 = vector.load %arg5[%c8, %c0_18] : memref<36x256xf32, #tpu.memory_space<vmem>>, vector<4x256xf32>
    tpu.vector_store %arg5[%c8, %c0_18], %56 {strides = array<i32>} : memref<36x256xf32, #tpu.memory_space<vmem>>, vector<4x256xf32>,
    %c1_i32_19 = arith.constant 1 : i32
    %58 = tpu.dynamic_rotate %1 by %c1_i32_19 dim 1 : vector<4x256xf32>, i32 -> vector<4x256xf32>
    %c-1_i32 = arith.constant -1 : i32
    %59 = vector.broadcast %c-1_i32 : i32 to vector<4x256xi32>
    %60 = arith.addi %2, %59 : vector<4x256xi32>
    %c0_i32_20 = arith.constant 0 : i32
    %61 = vector.broadcast %c0_i32_20 : i32 to vector<4x256xi32>
    %62 = arith.cmpi sge, %60, %61 : vector<4x256xi32>
    %c256_i32_21 = arith.constant 256 : i32
    %63 = vector.broadcast %c256_i32_21 : i32 to vector<4x256xi32>
    %64 = arith.cmpi slt, %60, %63 : vector<4x256xi32>
    %65 = arith.andi %62, %64 : vector<4x256xi1>
    %c0_i32_22 = arith.constant 0 : i32
    %66 = vector.broadcast %c0_i32_22 : i32 to vector<4x256xi32>
    %67 = arith.cmpi ne, %18, %66 : vector<4x256xi32>
    %68 = arith.andi %65, %67 : vector<4x256xi1>
    %cst_23 = arith.constant 0.000000e+00 : f32
    %69 = vector.broadcast %cst_23 : f32 to vector<4x256xf32>
    %70 = arith.select %68, %58, %69 : vector<4x256xi1>, vector<4x256xf32>
    %c12 = arith.constant 12 : index
    %c0_24 = arith.constant 0 : index
    %71 = vector.load %arg5[%c12, %c0_24] : memref<36x256xf32, #tpu.memory_space<vmem>>, vector<4x256xf32>
    tpu.vector_store %arg5[%c12, %c0_24], %70 {strides = array<i32>} : memref<36x256xf32, #tpu.memory_space<vmem>>, vector<4x256xf32>,
    %c16 = arith.constant 16 : index
    %c0_25 = arith.constant 0 : index
    %72 = vector.load %arg5[%c16, %c0_25] : memref<36x256xf32, #tpu.memory_space<vmem>>, vector<4x256xf32>
    tpu.vector_store %arg5[%c16, %c0_25], %1 {strides = array<i32>} : memref<36x256xf32, #tpu.memory_space<vmem>>, vector<4x256xf32>,
    %c255_i32 = arith.constant 255 : i32
    %73 = tpu.dynamic_rotate %1 by %c255_i32 dim 1 : vector<4x256xf32>, i32 -> vector<4x256xf32>
    %c1_i32_26 = arith.constant 1 : i32
    %74 = vector.broadcast %c1_i32_26 : i32 to vector<4x256xi32>
    %75 = arith.addi %2, %74 : vector<4x256xi32>
    %c0_i32_27 = arith.constant 0 : i32
    %76 = vector.broadcast %c0_i32_27 : i32 to vector<4x256xi32>
    %77 = arith.cmpi sge, %75, %76 : vector<4x256xi32>
    %c256_i32_28 = arith.constant 256 : i32
    %78 = vector.broadcast %c256_i32_28 : i32 to vector<4x256xi32>
    %79 = arith.cmpi slt, %75, %78 : vector<4x256xi32>
    %80 = arith.andi %77, %79 : vector<4x256xi1>
    %c15_i32_29 = arith.constant 15 : i32
    %81 = vector.broadcast %c15_i32_29 : i32 to vector<4x256xi32>
    %82 = arith.cmpi ne, %18, %81 : vector<4x256xi32>
    %83 = arith.andi %80, %82 : vector<4x256xi1>
    %cst_30 = arith.constant 0.000000e+00 : f32
    %84 = vector.broadcast %cst_30 : f32 to vector<4x256xf32>
    %85 = arith.select %83, %73, %84 : vector<4x256xi1>, vector<4x256xf32>
    %c20 = arith.constant 20 : index
    %c0_31 = arith.constant 0 : index
    %86 = vector.load %arg5[%c20, %c0_31] : memref<36x256xf32, #tpu.memory_space<vmem>>, vector<4x256xf32>
    tpu.vector_store %arg5[%c20, %c0_31], %85 {strides = array<i32>} : memref<36x256xf32, #tpu.memory_space<vmem>>, vector<4x256xf32>,
    %c241_i32 = arith.constant 241 : i32
    %87 = tpu.dynamic_rotate %1 by %c241_i32 dim 1 : vector<4x256xf32>, i32 -> vector<4x256xf32>
    %c15_i32_32 = arith.constant 15 : i32
    %88 = vector.broadcast %c15_i32_32 : i32 to vector<4x256xi32>
    %89 = arith.addi %2, %88 : vector<4x256xi32>
    %c0_i32_33 = arith.constant 0 : i32
    %90 = vector.broadcast %c0_i32_33 : i32 to vector<4x256xi32>
    %91 = arith.cmpi sge, %89, %90 : vector<4x256xi32>
    %c256_i32_34 = arith.constant 256 : i32
    %92 = vector.broadcast %c256_i32_34 : i32 to vector<4x256xi32>
    %93 = arith.cmpi slt, %89, %92 : vector<4x256xi32>
    %94 = arith.andi %91, %93 : vector<4x256xi1>
    %c0_i32_35 = arith.constant 0 : i32
    %95 = vector.broadcast %c0_i32_35 : i32 to vector<4x256xi32>
    %96 = arith.cmpi ne, %18, %95 : vector<4x256xi32>
    %97 = arith.andi %94, %96 : vector<4x256xi1>
    %cst_36 = arith.constant 0.000000e+00 : f32
    %98 = vector.broadcast %cst_36 : f32 to vector<4x256xf32>
    %99 = arith.select %97, %87, %98 : vector<4x256xi1>, vector<4x256xf32>
    %c24 = arith.constant 24 : index
    %c0_37 = arith.constant 0 : index
    %100 = vector.load %arg5[%c24, %c0_37] : memref<36x256xf32, #tpu.memory_space<vmem>>, vector<4x256xf32>
    tpu.vector_store %arg5[%c24, %c0_37], %99 {strides = array<i32>} : memref<36x256xf32, #tpu.memory_space<vmem>>, vector<4x256xf32>,
    %c240_i32 = arith.constant 240 : i32
    %101 = tpu.dynamic_rotate %1 by %c240_i32 dim 1 : vector<4x256xf32>, i32 -> vector<4x256xf32>
    %c16_i32_38 = arith.constant 16 : i32
    %102 = vector.broadcast %c16_i32_38 : i32 to vector<4x256xi32>
    %103 = arith.addi %2, %102 : vector<4x256xi32>
    %c0_i32_39 = arith.constant 0 : i32
    %104 = vector.broadcast %c0_i32_39 : i32 to vector<4x256xi32>
    %105 = arith.cmpi sge, %103, %104 : vector<4x256xi32>
    %c256_i32_40 = arith.constant 256 : i32
    %106 = vector.broadcast %c256_i32_40 : i32 to vector<4x256xi32>
    %107 = arith.cmpi slt, %103, %106 : vector<4x256xi32>
    %108 = arith.andi %105, %107 : vector<4x256xi1>
    %cst_41 = arith.constant 0.000000e+00 : f32
    %109 = vector.broadcast %cst_41 : f32 to vector<4x256xf32>
    %110 = arith.select %108, %101, %109 : vector<4x256xi1>, vector<4x256xf32>
    %c28 = arith.constant 28 : index
    %c0_42 = arith.constant 0 : index
    %111 = vector.load %arg5[%c28, %c0_42] : memref<36x256xf32, #tpu.memory_space<vmem>>, vector<4x256xf32>
    tpu.vector_store %arg5[%c28, %c0_42], %110 {strides = array<i32>} : memref<36x256xf32, #tpu.memory_space<vmem>>, vector<4x256xf32>,
    %c239_i32 = arith.constant 239 : i32
    %112 = tpu.dynamic_rotate %1 by %c239_i32 dim 1 : vector<4x256xf32>, i32 -> vector<4x256xf32>
    %c17_i32_43 = arith.constant 17 : i32
    %113 = vector.broadcast %c17_i32_43 : i32 to vector<4x256xi32>
    %114 = arith.addi %2, %113 : vector<4x256xi32>
    %c0_i32_44 = arith.constant 0 : i32
    %115 = vector.broadcast %c0_i32_44 : i32 to vector<4x256xi32>
    %116 = arith.cmpi sge, %114, %115 : vector<4x256xi32>
    %c256_i32_45 = arith.constant 256 : i32
    %117 = vector.broadcast %c256_i32_45 : i32 to vector<4x256xi32>
    %118 = arith.cmpi slt, %114, %117 : vector<4x256xi32>
    %119 = arith.andi %116, %118 : vector<4x256xi1>
    %c15_i32_46 = arith.constant 15 : i32
    %120 = vector.broadcast %c15_i32_46 : i32 to vector<4x256xi32>
    %121 = arith.cmpi ne, %18, %120 : vector<4x256xi32>
    %122 = arith.andi %119, %121 : vector<4x256xi1>
    %cst_47 = arith.constant 0.000000e+00 : f32
    %123 = vector.broadcast %cst_47 : f32 to vector<4x256xf32>
    %124 = arith.select %122, %112, %123 : vector<4x256xi1>, vector<4x256xf32>
    %c32 = arith.constant 32 : index
    %c0_48 = arith.constant 0 : index
    %125 = vector.load %arg5[%c32, %c0_48] : memref<36x256xf32, #tpu.memory_space<vmem>>, vector<4x256xf32>
    tpu.vector_store %arg5[%c32, %c0_48], %124 {strides = array<i32>} : memref<36x256xf32, #tpu.memory_space<vmem>>, vector<4x256xf32>,
    %c0_49 = arith.constant 0 : index
    %c0_50 = arith.constant 0 : index
    %126 = vector.load %arg2[%c0_49, %c0_50] : memref<16x36xf32, #tpu.memory_space<vmem>>, vector<16x36xf32>
    %c0_51 = arith.constant 0 : index
    %c0_52 = arith.constant 0 : index
    %127 = vector.load %arg5[%c0_51, %c0_52] : memref<36x256xf32, #tpu.memory_space<vmem>>, vector<36x256xf32>
    %cst_53 = arith.constant dense<0.000000e+00> : vector<16x256xf32>
    %128 = tpu.matmul %126, %127, %cst_53 {dimension_numbers = #tpu.dot_dimension_numbers<[1], [0], [0], [1], [0, 0, 1, 1], [], []>} : vector<16x36xf32>, vector<36x256xf32>, vector<16x256xf32> -> vector<16x256xf32>
    %c0_54 = arith.constant 0 : index
    %c0_55 = arith.constant 0 : index
    %129 = vector.load %arg3[%c0_54, %c0_55] : memref<16x1xf32, #tpu.memory_space<vmem>>, vector<16x1xf32>
    %130 = vector.broadcast %129 : vector<16x1xf32> to vector<16x256xf32>
    %131 = arith.addf %128, %130 : vector<16x256xf32>
    %c0_56 = arith.constant 0 : index
    %c0_57 = arith.constant 0 : index
    %c0_58 = arith.constant 0 : index
    %132 = vector.load %arg4[%c0_56, %c0_57, %c0_58] : memref<1x16x256xf32, #tpu.memory_space<vmem>>, vector<1x16x256xf32>
    %133 = vector.shape_cast %132 : vector<1x16x256xf32> to vector<16x256xf32>
    %134 = vector.shape_cast %131 : vector<16x256xf32> to vector<1x16x256xf32>
    tpu.vector_store %arg4[%c0_56, %c0_57, %c0_58], %134 {strides = array<i32>} : memref<1x16x256xf32, #tpu.memory_space<vmem>>, vector<1x16x256xf32>,
    return
  }
  func.func @transform_0(%arg0: i32) -> (i32, i32, i32) {
    %c0_i32 = arith.constant 0 : i32
    %c0_i32_0 = arith.constant 0 : i32
    %c0_i32_1 = arith.constant 0 : i32
    return %arg0, %c0_i32, %c0_i32_0 : i32, i32, i32
  }
  func.func @transform_1(%arg0: i32) -> (i32, i32) {
    %c0_i32 = arith.constant 0 : i32
    %c0_i32_0 = arith.constant 0 : i32
    %c0_i32_1 = arith.constant 0 : i32
    return %c0_i32, %c0_i32_0 : i32, i32
  }
  func.func @transform_2(%arg0: i32) -> (i32, i32) {
    %c0_i32 = arith.constant 0 : i32
    %c0_i32_0 = arith.constant 0 : i32
    %c0_i32_1 = arith.constant 0 : i32
    return %c0_i32, %c0_i32_0 : i32, i32
  }
  func.func @transform_3(%arg0: i32) -> (i32, i32, i32) {
    %c0_i32 = arith.constant 0 : i32
    %c0_i32_0 = arith.constant 0 : i32
    %c0_i32_1 = arith.constant 0 : i32
    return %arg0, %c0_i32, %c0_i32_0 : i32, i32, i32
  }
}

</mosaic_0001>

<llo_original>
// kernel: upsample_block.1
$region0: #{upsample_block.1}
  #allocation0 [shape = 'u32[]', space=smem, size = 0x4, offset = 0x4, fixed_abs, tag = 'smem constant byte address 0x4 - core index']
  #allocation1 [shape = 'u32[72,128]{1,0:T(1,128)}', space=vmem, size = 0x9000, scoped, tag = 'internal scratch']
  #allocation2 [shape = 'f32[36,256]{1,0:T(8,128)}', space=vmem, size = 0xa000, scoped, tag = 'scratch operand']
  %s0 = inlined_call_operand.vmem [shape: f32[2,4,256], index: 0, kind: input, shape index: {}]
  %s1 = inlined_call_operand.vmem [shape: f32[16,36], index: 1, kind: input, shape index: {}]
  %s2 = inlined_call_operand.vmem [shape: f32[16,1], index: 2, kind: input, shape index: {}]
  %s3 = inlined_call_operand.vmem [shape: f32[2,16,256], index: 3, kind: output, shape index: {}]
  %s4 = sld [smem:[#allocation0]]
  $region45: #{upsample_block.1} parent=0
    _
  %s6 = ssub.s32 1, %s4
  %s7 = scalar_select 0, %s6, %s4
  loop: start=0, step=1, limit=4
  $region2: #{upsample_block.1} parent=0 // loop_pre_header
    _
  $region3: #{upsample_block.1} parent=0 // loop_header
    %s9 = sphi 0, %s13
    %p10 = scmp.ge.s32.totalorder %s9, 4
    %s19 = sphi 0, %s21
    %s22 = sphi 0, %s19
    %s23 = sphi 0, %s22
    %s39 = sphi 0, %s23
    %s43 = sphi 0, %s43
    %s45 = sphi 0, %s43
    %s46 = sphi 0, %s45
    %s60 = sphi 0, %s46
    %s64 = sphi 0, %s64
    %s66 = sphi 0, %s64
    %s67 = sphi 0, %s66
    %s81 = sphi 0, %s67
    %s87 = sphi 0, %s89
    %s90 = sphi 0, %s87
    %s91 = sphi 0, %s90
    %s107 = sphi 0, %s91
  $region4: #{upsample_block.1} parent=0 // loop_header_branch
    %12 = sbr.rel (%p10) target = $region8
  $region5: #{upsample_block.1} parent=0 // loop_body
    %s14 = ssub.s32 %s9, 1
    %s15 = ssub.s32 %s9, 2
    %s16 = sadd.s32 %s9, 1
    %s17 = ssub.s32 %s9, %s16
    %p18 = scmp.eq.s32.totalorder %s17, 0
    %s20 = sadd.s32 %s19, 1
    %s21 = scalar_select %p18, %s19, %s20
    %p24 = pneg %p18
    %p25 = scmp.eq.s32.totalorder %s9, 1
    %p26 = por %p24, %p25
    %p27 = scmp.ne.s32.totalorder %s19, %s22
    %p28 = scmp.eq.s32.totalorder %s9, 0
    %p29 = por %p27, %p28
    %p30 = scmp.ne.s32.totalorder %s19, %s22
    %p31 = scmp.eq.s32.totalorder %s14, 1
    %p32 = por %p30, %p31
    %p33 = scmp.ne.s32.totalorder %s22, %s23
    %p34 = scmp.eq.s32.totalorder %s14, 0
    %p35 = por %p33, %p34
    %p36 = scmp.ne.s32.totalorder %s22, %s23
    %p37 = scmp.eq.s32.totalorder %s15, 1
    %p38 = por %p36, %p37
    %p40 = scmp.ne.s32.totalorder %s23, %s39
    %p41 = scmp.eq.s32.totalorder %s15, 0
    %p42 = por %p40, %p41
    %s44 = sadd.s32 %s43, 1
    %p47 = scmp.eq.s32.totalorder %s9, 1
    %p48 = scmp.ne.s32.totalorder %s43, %s45
    %p49 = scmp.eq.s32.totalorder %s9, 0
    %p50 = por %p48, %p49
    %p51 = scmp.ne.s32.totalorder %s43, %s45
    %p52 = scmp.eq.s32.totalorder %s14, 1
    %p53 = por %p51, %p52
    %p54 = scmp.ne.s32.totalorder %s45, %s46
    %p55 = scmp.eq.s32.totalorder %s14, 0
    %p56 = por %p54, %p55
    %p57 = scmp.ne.s32.totalorder %s45, %s46
    %p58 = scmp.eq.s32.totalorder %s15, 1
    %p59 = por %p57, %p58
    %p61 = scmp.ne.s32.totalorder %s46, %s60
    %p62 = scmp.eq.s32.totalorder %s15, 0
    %p63 = por %p61, %p62
    %s65 = sadd.s32 %s64, 1
    %p68 = scmp.eq.s32.totalorder %s9, 1
    %p69 = scmp.ne.s32.totalorder %s64, %s66
    %p70 = scmp.eq.s32.totalorder %s9, 0
    %p71 = por %p69, %p70
    %p72 = scmp.ne.s32.totalorder %s64, %s66
    %p73 = scmp.eq.s32.totalorder %s14, 1
    %p74 = por %p72, %p73
    %p75 = scmp.ne.s32.totalorder %s66, %s67
    %p76 = scmp.eq.s32.totalorder %s14, 0
    %p77 = por %p75, %p76
    %p78 = scmp.ne.s32.totalorder %s66, %s67
    %p79 = scmp.eq.s32.totalorder %s15, 1
    %p80 = por %p78, %p79
    %p82 = scmp.ne.s32.totalorder %s67, %s81
    %p83 = scmp.eq.s32.totalorder %s15, 0
    %p84 = por %p82, %p83
    %s85 = ssub.s32 %s9, %s16
    %p86 = scmp.eq.s32.totalorder %s85, 0
    %s88 = sadd.s32 %s87, 1
    %s89 = scalar_select %p86, %s87, %s88
    %p92 = pneg %p86
    %p93 = scmp.eq.s32.totalorder %s9, 1
    %p94 = por %p92, %p93
    %p95 = scmp.ne.s32.totalorder %s87, %s90
    %p96 = scmp.eq.s32.totalorder %s9, 0
    %p97 = por %p95, %p96
    %p98 = scmp.ne.s32.totalorder %s87, %s90
    %p99 = scmp.eq.s32.totalorder %s14, 1
    %p100 = por %p98, %p99
    %p101 = scmp.ne.s32.totalorder %s90, %s91
    %p102 = scmp.eq.s32.totalorder %s14, 0
    %p103 = por %p101, %p102
    %p104 = scmp.ne.s32.totalorder %s90, %s91
    %p105 = scmp.eq.s32.totalorder %s15, 1
    %p106 = por %p104, %p105
    %p108 = scmp.ne.s32.totalorder %s91, %s107
    %p109 = scmp.eq.s32.totalorder %s15, 0
    %p110 = por %p108, %p109
    %p111 = scmp.le.s32.totalorder 1, %s9
    %p112 = scmp.lt.s32.totalorder %s9, 3
    %p113 = pnand %p111, %p112
    %p114 = pneg %p113
    // Predicated region
    $region9: #{upsample_block.1} parent=5 // pred_check
      _
    $region10: #{upsample_block.1} parent=5 // pred_check_branch
      %116 = sbr.rel (%p113) target = $region12
    $region11: #{upsample_block.1} parent=5 // pred_region
      %s117 = ssub.s32 %s9, 1
      // Predicated region
      $region13: #{upsample_block.1} parent=11 // pred_check
        %p118 = pneg %p56
      $region14: #{upsample_block.1} parent=11 // pred_check_branch
        %120 = sbr.rel (%p118) target = $region16
      $region15: #{upsample_block.1} parent=11 // pred_region
        _
      $region16: #{upsample_block.1} parent=11 // pred_fallthru
        _
      // Predicated region
      $region17: #{upsample_block.1} parent=11 // pred_check
        %p121 = pneg %p77
      $region18: #{upsample_block.1} parent=11 // pred_check_branch
        %123 = sbr.rel (%p121) target = $region20
      $region19: #{upsample_block.1} parent=11 // pred_region
        _
      $region20: #{upsample_block.1} parent=11 // pred_fallthru
        _
    $region12: #{upsample_block.1} parent=5 // pred_fallthru
      _
    %p124 = scmp.lt.s32.totalorder %s9, 2
    // Predicated region
    $region21: #{upsample_block.1} parent=5 // pred_check
      %p125 = pneg %p124
    $region22: #{upsample_block.1} parent=5 // pred_check_branch
      %127 = sbr.rel (%p125) target = $region24
    $region23: #{upsample_block.1} parent=5 // pred_region
      // Predicated region
      $region25: #{upsample_block.1} parent=23 // pred_check
        %p128 = pneg %p29
      $region26: #{upsample_block.1} parent=23 // pred_check_branch
        %130 = sbr.rel (%p128) target = $region28
      $region27: #{upsample_block.1} parent=23 // pred_region
        %p131 = scmp.lt.s32.totalorder %s9, 1
        %s132 = scalar_select %p131, %s9, 1
        %s133 = smul.addr %s132, 2
        %s134 = smul.addr %s133, 4
        %s135 = scalar_lea.vmem %s0, %s134
      $region28: #{upsample_block.1} parent=23 // pred_fallthru
        _
    $region24: #{upsample_block.1} parent=5 // pred_fallthru
      _
    %p136 = scmp.le.s32.totalorder 1, %s9
    %p137 = scmp.lt.s32.totalorder %s9, 3
    %p138 = pnand %p136, %p137
    %p139 = pneg %p138
    // Predicated region
    $region29: #{upsample_block.1} parent=5 // pred_check
      _
    $region30: #{upsample_block.1} parent=5 // pred_check_branch
      %141 = sbr.rel (%p138) target = $region32
    $region31: #{upsample_block.1} parent=5 // pred_region
      %s142 = ssub.s32 %s9, 1
      %p143 = scmp.lt.s32.totalorder %s14, 1
      %s144 = scalar_select %p143, %s14, 1
      %s145 = smul.addr %s144, 2
      %s146 = smul.addr %s145, 4
      %s147 = scalar_lea.vmem %s0, %s146
      %p148 = pneg %p35
      %p149 = pneg %p32
      %p150 = pneg %p56
      %p151 = pneg %p53
      %p152 = pneg %p77
      %p153 = pneg %p74
      %p154 = pneg %p103
      %p155 = pneg %p100
      %p156 = scmp.lt.s32.totalorder %s14, 1
      %s157 = scalar_select %p156, %s14, 1
      %s158 = smul.addr %s157, 4
      %s159 = smul.addr %s158, 8
      %s160 = scalar_lea.vmem %s3, %s159
      %p161 = scmp.lt.s32.totalorder %s14, 1
      %s162 = scalar_select %p161, %s14, 1
      %s163 = smul.addr %s162, 2
      %s164 = smul.addr %s163, 4
      %s165 = scalar_lea.vmem %s0, %s164
      %p166 = scmp.lt.s32.totalorder %s14, 1
      %s167 = scalar_select %p166, %s14, 1
      %s168 = smul.addr %s167, 4
      %s169 = smul.addr %s168, 8
      %s170 = scalar_lea.vmem %s3, %s169
      %v171 = vld [vmem:[%s165] sm:$0xff]
      %v172 = vlaneseq
      %v173 = vand.u32 %v172, 127
      %v174 = vadd.s32 %v173, 128
      %vm175 = vcmp.lt.s32.totalorder %v173, 0
      %v176 = vsub.s32 0, %v173
      %v177 = vsel %vm175, %v176, %v173
      %v178 = vshrl.u32 %v177, 4
      %v179 = vand.u32 %v177, 15
      %v180 = vsub.s32 0, %v179
      %v181 = vsel %vm175, %v180, %v179
      %vm182 = vcmp.lt.s32.totalorder %v174, 0
      %v183 = vsub.s32 0, %v174
      %v184 = vsel %vm182, %v183, %v174
      %v185 = vshrl.u32 %v184, 4
      %v186 = vand.u32 %v184, 15
      %v187 = vsub.s32 0, %v186
      %v188 = vsel %vm182, %v187, %v186
      %vm189 = vcmp.ne.s32.totalorder %v181, 0
      %vm190 = vcmp.ne.s32.totalorder %v188, 0
      %vm191 = vcmp.lt.s32.totalorder %v181, 0
      %vm192 = vcmp.lt.s32.totalorder %v188, 0
      %vm193 = vmand %vm191, %vm189
      %vm194 = vmand %vm192, %vm190
      %v195 = vadd.s32 %v181, 16
      %v196 = vadd.s32 %v188, 16
      %v197 = vsel %vm193, %v195, %v181
      %v198 = vsel %vm194, %v196, %v188
      %200 = vst [vmem:[#allocation1] ss:$2 sm:$0xff] %v171
      %v201 = vld.sshfl [vmem:[#allocation1] sm:$0xff pattern:$0x75316420]
      %v202 = vld.sshfl [vmem:[#allocation1 + $0x8] sm:$0xff pattern:$0x75316420]
      %205 = vrot.lane.b32.xlu0 %v201, 17
      %v206 = vpop.permute.xlu0 %205
      %207 = vrot.lane.b32.xlu0 %v202, 17
      %v208 = vpop.permute.xlu0 %207
      %vm209 = vcmp.lt.s32.totalorder %v173, 17
      %v210 = vsel %vm209, %v206, %v208
      %v211 = vsel %vm209, %v208, %v206
      %v212 = vadd.s32 %v173, 4294967279
      %v213 = vadd.s32 %v174, 4294967279
      %vm214 = vcmp.ge.s32.totalorder %v212, 0
      %vm215 = vcmp.ge.s32.totalorder %v213, 0
      %vm216 = vcmp.lt.s32.totalorder %v212, 256
      %vm217 = vcmp.lt.s32.totalorder %v213, 256
      %vm218 = vmand %vm214, %vm216
      %vm219 = vmand %vm215, %vm217
      %vm220 = vcmp.ne.s32.totalorder %v197, 0
      %vm221 = vcmp.ne.s32.totalorder %v198, 0
      %vm222 = vmand %vm218, %vm220
      %vm223 = vmand %vm219, %vm221
      %v224 = vsel %vm222, %v211, 0.0
      %v225 = vsel %vm223, %v210, 0.0
      %226 = vst [vmem:[#allocation2] sm:$0xf] %v224
      %227 = vst [vmem:[#allocation2 + $0x8] sm:$0xf] %v225
      %228 = vst [vmem:[#allocation1] ss:$2 sm:$0xff] %v171
      %v229 = vld.sshfl [vmem:[#allocation1] sm:$0xff pattern:$0x75316420]
      %v230 = vld.sshfl [vmem:[#allocation1 + $0x8] sm:$0xff pattern:$0x75316420]
      %233 = vrot.lane.b32.xlu0 %v229, 16
      %v234 = vpop.permute.xlu0 %233
      %235 = vrot.lane.b32.xlu0 %v230, 16
      %v236 = vpop.permute.xlu0 %235
      %vm237 = vcmp.lt.s32.totalorder %v173, 16
      %v238 = vsel %vm237, %v234, %v236
      %v239 = vsel %vm237, %v236, %v234
      %v240 = vadd.s32 %v173, 4294967280
      %v241 = vadd.s32 %v174, 4294967280
      %vm242 = vcmp.ge.s32.totalorder %v240, 0
      %vm243 = vcmp.ge.s32.totalorder %v241, 0
      %vm244 = vcmp.lt.s32.totalorder %v240, 256
      %vm245 = vcmp.lt.s32.totalorder %v241, 256
      %vm246 = vmand %vm242, %vm244
      %vm247 = vmand %vm243, %vm245
      %v248 = vsel %vm246, %v239, 0.0
      %v249 = vsel %vm247, %v238, 0.0
      %v252 = vrot.slane %v248, 4
      %v253 = vrot.slane %v249, 4
      %256 = vst [vmem:[#allocation2] sm:$0xf0] %v252
      %257 = vst [vmem:[#allocation2 + $0x8] sm:$0xf0] %v253
      %258 = vst [vmem:[#allocation1] ss:$2 sm:$0xff] %v171
      %v259 = vld.sshfl [vmem:[#allocation1] sm:$0xff pattern:$0x75316420]
      %v260 = vld.sshfl [vmem:[#allocation1 + $0x8] sm:$0xff pattern:$0x75316420]
      %263 = vrot.lane.b32.xlu0 %v259, 15
      %v264 = vpop.permute.xlu0 %263
      %265 = vrot.lane.b32.xlu0 %v260, 15
      %v266 = vpop.permute.xlu0 %265
      %vm267 = vcmp.lt.s32.totalorder %v173, 15
      %v268 = vsel %vm267, %v264, %v266
      %v269 = vsel %vm267, %v266, %v264
      %v270 = vadd.s32 %v173, 4294967281
      %v271 = vadd.s32 %v174, 4294967281
      %vm272 = vcmp.ge.s32.totalorder %v270, 0
      %vm273 = vcmp.ge.s32.totalorder %v271, 0
      %vm274 = vcmp.lt.s32.totalorder %v270, 256
      %vm275 = vcmp.lt.s32.totalorder %v271, 256
      %vm276 = vmand %vm272, %vm274
      %vm277 = vmand %vm273, %vm275
      %vm278 = vcmp.ne.s32.totalorder %v197, 15
      %vm279 = vcmp.ne.s32.totalorder %v198, 15
      %vm280 = vmand %vm276, %vm278
      %vm281 = vmand %vm277, %vm279
      %v282 = vsel %vm280, %v269, 0.0
      %v283 = vsel %vm281, %v268, 0.0
      %284 = vst [vmem:[#allocation2 + $0x10] sm:$0xf] %v282
      %285 = vst [vmem:[#allocation2 + $0x18] sm:$0xf] %v283
      %286 = vst [vmem:[#allocation1] ss:$2 sm:$0xff] %v171
      %v287 = vld.sshfl [vmem:[#allocation1] sm:$0xff pattern:$0x75316420]
      %v288 = vld.sshfl [vmem:[#allocation1 + $0x8] sm:$0xff pattern:$0x75316420]
      %291 = vrot.lane.b32.xlu0 %v287, 1
      %v292 = vpop.permute.xlu0 %291
      %293 = vrot.lane.b32.xlu0 %v288, 1
      %v294 = vpop.permute.xlu0 %293
      %vm295 = vcmp.lt.s32.totalorder %v173, 1
      %v296 = vsel %vm295, %v292, %v294
      %v297 = vsel %vm295, %v294, %v292
      %v298 = vadd.s32 %v173, 4294967295
      %v299 = vadd.s32 %v174, 4294967295
      %vm300 = vcmp.ge.s32.totalorder %v298, 0
      %vm301 = vcmp.ge.s32.totalorder %v299, 0
      %vm302 = vcmp.lt.s32.totalorder %v298, 256
      %vm303 = vcmp.lt.s32.totalorder %v299, 256
      %vm304 = vmand %vm300, %vm302
      %vm305 = vmand %vm301, %vm303
      %vm306 = vmand %vm304, %vm220
      %vm307 = vmand %vm305, %vm221
      %v308 = vsel %vm306, %v297, 0.0
      %v309 = vsel %vm307, %v296, 0.0
      %v312 = vrot.slane %v308, 4
      %v313 = vrot.slane %v309, 4
      %316 = vst [vmem:[#allocation2 + $0x10] sm:$0xf0] %v312
      %317 = vst [vmem:[#allocation2 + $0x18] sm:$0xf0] %v313
      %318 = vst [vmem:[#allocation1] ss:$2 sm:$0xff] %v171
      %v319 = vld.sshfl [vmem:[#allocation1] sm:$0xff pattern:$0x75316420]
      %v320 = vld.sshfl [vmem:[#allocation1 + $0x8] sm:$0xff pattern:$0x75316420]
      %323 = vst [vmem:[#allocation2 + $0x20] sm:$0xf] %v319
      %324 = vst [vmem:[#allocation2 + $0x28] sm:$0xf] %v320
      %325 = vst [vmem:[#allocation1] ss:$2 sm:$0xff] %v171
      %v326 = vld.sshfl [vmem:[#allocation1] sm:$0xff pattern:$0x75316420]
      %v327 = vld.sshfl [vmem:[#allocation1 + $0x8] sm:$0xff pattern:$0x75316420]
      %330 = vrot.lane.b32.xlu0 %v326, 127
      %v331 = vpop.permute.xlu0 %330
      %332 = vrot.lane.b32.xlu0 %v327, 127
      %v333 = vpop.permute.xlu0 %332
      %vm334 = vcmp.lt.s32.totalorder %v173, 127
      %v335 = vsel %vm334, %v331, %v333
      %v336 = vsel %vm334, %v333, %v331
      %v337 = vadd.s32 %v173, 1
      %v338 = vadd.s32 %v174, 1
      %vm339 = vcmp.ge.s32.totalorder %v337, 0
      %vm340 = vcmp.ge.s32.totalorder %v338, 0
      %vm341 = vcmp.lt.s32.totalorder %v337, 256
      %vm342 = vcmp.lt.s32.totalorder %v338, 256
      %vm343 = vmand %vm339, %vm341
      %vm344 = vmand %vm340, %vm342
      %vm345 = vmand %vm343, %vm278
      %vm346 = vmand %vm344, %vm279
      %v347 = vsel %vm345, %v335, 0.0
      %v348 = vsel %vm346, %v336, 0.0
      %v351 = vrot.slane %v347, 4
      %v352 = vrot.slane %v348, 4
      %355 = vst [vmem:[#allocation2 + $0x20] sm:$0xf0] %v351
      %356 = vst [vmem:[#allocation2 + $0x28] sm:$0xf0] %v352
      %357 = vst [vmem:[#allocation1] ss:$2 sm:$0xff] %v171
      %v358 = vld.sshfl [vmem:[#allocation1] sm:$0xff pattern:$0x75316420]
      %v359 = vld.sshfl [vmem:[#allocation1 + $0x8] sm:$0xff pattern:$0x75316420]
      %362 = vrot.lane.b32.xlu0 %v358, 113
      %v363 = vpop.permute.xlu0 %362
      %364 = vrot.lane.b32.xlu0 %v359, 113
      %v365 = vpop.permute.xlu0 %364
      %vm366 = vcmp.lt.s32.totalorder %v173, 113
      %v367 = vsel %vm366, %v363, %v365
      %v368 = vsel %vm366, %v365, %v363
      %v369 = vadd.s32 %v173, 15
      %v370 = vadd.s32 %v174, 15
      %vm371 = vcmp.ge.s32.totalorder %v369, 0
      %vm372 = vcmp.ge.s32.totalorder %v370, 0
      %vm373 = vcmp.lt.s32.totalorder %v369, 256
      %vm374 = vcmp.lt.s32.totalorder %v370, 256
      %vm375 = vmand %vm371, %vm373
      %vm376 = vmand %vm372, %vm374
      %vm377 = vmand %vm375, %vm220
      %vm378 = vmand %vm376, %vm221
      %v379 = vsel %vm377, %v367, 0.0
      %v380 = vsel %vm378, %v368, 0.0
      %381 = vst [vmem:[#allocation2 + $0x30] sm:$0xf] %v379
      %382 = vst [vmem:[#allocation2 + $0x38] sm:$0xf] %v380
      %383 = vst [vmem:[#allocation1] ss:$2 sm:$0xff] %v171
      %v384 = vld.sshfl [vmem:[#allocation1] sm:$0xff pattern:$0x75316420]
      %v385 = vld.sshfl [vmem:[#allocation1 + $0x8] sm:$0xff pattern:$0x75316420]
      %388 = vrot.lane.b32.xlu0 %v384, 112
      %v389 = vpop.permute.xlu0 %388
      %390 = vrot.lane.b32.xlu0 %v385, 112
      %v391 = vpop.permute.xlu0 %390
      %vm392 = vcmp.lt.s32.totalorder %v173, 112
      %v393 = vsel %vm392, %v389, %v391
      %v394 = vsel %vm392, %v391, %v389
      %v395 = vadd.s32 %v173, 16
      %v396 = vadd.s32 %v174, 16
      %vm397 = vcmp.ge.s32.totalorder %v395, 0
      %vm398 = vcmp.ge.s32.totalorder %v396, 0
      %vm399 = vcmp.lt.s32.totalorder %v395, 256
      %vm400 = vcmp.lt.s32.totalorder %v396, 256
      %vm401 = vmand %vm397, %vm399
      %vm402 = vmand %vm398, %vm400
      %v403 = vsel %vm401, %v393, 0.0
      %v404 = vsel %vm402, %v394, 0.0
      %v407 = vrot.slane %v403, 4
      %v408 = vrot.slane %v404, 4
      %411 = vst [vmem:[#allocation2 + $0x30] sm:$0xf0] %v407
      %412 = vst [vmem:[#allocation2 + $0x38] sm:$0xf0] %v408
      %413 = vst [vmem:[#allocation1] ss:$2 sm:$0xff] %v171
      %v414 = vld.sshfl [vmem:[#allocation1] sm:$0xff pattern:$0x75316420]
      %v415 = vld.sshfl [vmem:[#allocation1 + $0x8] sm:$0xff pattern:$0x75316420]
      %418 = vrot.lane.b32.xlu0 %v414, 111
      %v419 = vpop.permute.xlu0 %418
      %420 = vrot.lane.b32.xlu0 %v415, 111
      %v421 = vpop.permute.xlu0 %420
      %vm422 = vcmp.lt.s32.totalorder %v173, 111
      %v423 = vsel %vm422, %v419, %v421
      %v424 = vsel %vm422, %v421, %v419
      %v425 = vadd.s32 %v173, 17
      %v426 = vadd.s32 %v174, 17
      %vm427 = vcmp.ge.s32.totalorder %v425, 0
      %vm428 = vcmp.ge.s32.totalorder %v426, 0
      %vm429 = vcmp.lt.s32.totalorder %v425, 256
      %vm430 = vcmp.lt.s32.totalorder %v426, 256
      %vm431 = vmand %vm427, %vm429
      %vm432 = vmand %vm428, %vm430
      %vm433 = vmand %vm431, %vm278
      %vm434 = vmand %vm432, %vm279
      %v435 = vsel %vm433, %v423, 0.0
      %v436 = vsel %vm434, %v424, 0.0
      %437 = vst [vmem:[#allocation2 + $0x40] sm:$0xf] %v435
      %438 = vst [vmem:[#allocation2 + $0x48] sm:$0xf] %v436
      %v439 = vld [vmem:[%s1] sm:$0xff]
      %v440 = vld [vmem:[%s1 + $0x8] sm:$0xff]
      %v441 = vld [vmem:[#allocation2] sm:$0xff]
      %v442 = vld [vmem:[#allocation2 + $0x8] sm:$0xff]
      %v443 = vld [vmem:[#allocation2 + $0x10] sm:$0xff]
      %v444 = vld [vmem:[#allocation2 + $0x18] sm:$0xff]
      %v445 = vld [vmem:[#allocation2 + $0x20] sm:$0xff]
      %v446 = vld [vmem:[#allocation2 + $0x28] sm:$0xff]
      %v447 = vld [vmem:[#allocation2 + $0x30] sm:$0xff]
      %v448 = vld [vmem:[#allocation2 + $0x38] sm:$0xff]
      %v449 = vld [vmem:[#allocation2 + $0x40] sm:$0xf]
      %v450 = vld [vmem:[#allocation2 + $0x48] sm:$0xf]
      %v451 = vld [vmem:[%s2] sm:$0xff]
      %v452 = vld [vmem:[%s2 + $0x8] sm:$0xff]
      %454 = vset.pattern.permute.xlu0 0
      %455 = vperm.xlu0 %454, %v451
      %v456 = vpop.permute.xlu0 %455
      %459 = vset.pattern.permute.xlu0 0
      %460 = vperm.xlu0 %459, %v452
      %v461 = vpop.permute.xlu0 %460
      %vm463 = vcmask 293888
      %v465 = vsel %vm463, %v439, 0
      %v468 = vsel %vm463, %v440, 0
      %vm470 = vcmask 1043456
      %v472 = vsel %vm470, %v449, 0
      %v475 = vsel %vm470, %v450, 0
      %477 = vmatpush.msra.mxu0 0.0
      %478 = vmatpush.msra.mxu0 0.0
      %479 = vmatpush.msra.mxu0 0.0
      %480 = vmatpush.msra.mxu0 0.0
      %481 = vmatpush.msra.mxu0 0.0
      %482 = vmatpush.msra.mxu0 0.0
      %483 = vmatpush.msra.mxu0 0.0
      %484 = vmatpush.msra.mxu0 0.0
      %485 = vmatpush.msra.mxu0 0.0
      %486 = vmatpush.msra.mxu0 0.0
      %487 = vmatpush.msra.mxu0 0.0
      %488 = vmatpush.msra.mxu0 %v472
      %489 = vmatpush.msra.mxu0 %v447
      %490 = vmatpush.msra.mxu0 %v445
      %491 = vmatpush.msra.mxu0 %v443
      %492 = vmatpush.msra.mxu0 %v441
      %493 = vmatmul.f32.gmra.mxu0 %v465
      %v494 = vpop.f32.mrf.mxu0
      %v495 = vadd.f32 %v456, %v494
      %496 = vmatmul.f32.gmra.mxu0 %v468
      %v497 = vpop.f32.mrf.mxu0
      %v498 = vadd.f32 %v461, %v497
      %499 = vdwg.mxu0
      %500 = vmatpush.msra.mxu0 0.0
      %501 = vmatpush.msra.mxu0 0.0
      %502 = vmatpush.msra.mxu0 0.0
      %503 = vmatpush.msra.mxu0 0.0
      %504 = vmatpush.msra.mxu0 0.0
      %505 = vmatpush.msra.mxu0 0.0
      %506 = vmatpush.msra.mxu0 0.0
      %507 = vmatpush.msra.mxu0 0.0
      %508 = vmatpush.msra.mxu0 0.0
      %509 = vmatpush.msra.mxu0 0.0
      %510 = vmatpush.msra.mxu0 0.0
      %511 = vmatpush.msra.mxu0 %v475
      %512 = vmatpush.msra.mxu0 %v448
      %513 = vmatpush.msra.mxu0 %v446
      %514 = vmatpush.msra.mxu0 %v444
      %515 = vmatpush.msra.mxu0 %v442
      %516 = vmatmul.f32.gmra.mxu0 %v465
      %v517 = vpop.f32.mrf.mxu0
      %v518 = vadd.f32 %v456, %v517
      %519 = vmatmul.f32.gmra.mxu0 %v468
      %v520 = vpop.f32.mrf.mxu0
      %v521 = vadd.f32 %v461, %v520
      %522 = vdwg.mxu0
      %523 = vst [vmem:[%s170] sm:$0xff] %v495
      %524 = vst [vmem:[%s170 + $0x8] sm:$0xff] %v518
      %525 = vst [vmem:[%s170 + $0x10] sm:$0xff] %v498
      %526 = vst [vmem:[%s170 + $0x18] sm:$0xff] %v521
      %p527 = scmp.lt.s32.totalorder %s14, 1
      %s528 = scalar_select %p527, %s14, 1
      %s529 = smul.addr %s528, 4
      %s530 = smul.addr %s529, 8
      %s531 = scalar_lea.vmem %s3, %s530
      // Predicated region
      $region33: #{upsample_block.1} parent=31 // pred_check
        %p532 = pneg %p100
      $region34: #{upsample_block.1} parent=31 // pred_check_branch
        %534 = sbr.rel (%p532) target = $region36
      $region35: #{upsample_block.1} parent=31 // pred_region
        _
      $region36: #{upsample_block.1} parent=31 // pred_fallthru
        _
    $region32: #{upsample_block.1} parent=5 // pred_fallthru
      _
    %p535 = scmp.le.s32.totalorder 2, %s9
    // Predicated region
    $region37: #{upsample_block.1} parent=5 // pred_check
      %p536 = pneg %p535
    $region38: #{upsample_block.1} parent=5 // pred_check_branch
      %538 = sbr.rel (%p536) target = $region40
    $region39: #{upsample_block.1} parent=5 // pred_region
      %s539 = ssub.s32 %s9, 2
      // Predicated region
      $region41: #{upsample_block.1} parent=39 // pred_check
        %p540 = pneg %p106
      $region42: #{upsample_block.1} parent=39 // pred_check_branch
        %542 = sbr.rel (%p540) target = $region44
      $region43: #{upsample_block.1} parent=39 // pred_region
        %p543 = scmp.lt.s32.totalorder %s15, 1
        %s544 = scalar_select %p543, %s15, 1
        %s545 = smul.addr %s544, 4
        %s546 = smul.addr %s545, 8
        %s547 = scalar_lea.vmem %s3, %s546
      $region44: #{upsample_block.1} parent=39 // pred_fallthru
        _
    $region40: #{upsample_block.1} parent=5 // pred_fallthru
      _
  $region6: #{upsample_block.1} parent=0 // loop_footer
    %s13 = sadd.s32 1, %s9
  $region7: #{upsample_block.1} parent=0 // loop_footer_branch
    %8 = sbr.rel target = $region3
  $region8: #{upsample_block.1} parent=0 // loop_exit
    _

</llo_original>
